<compile_context>
chip_gen: v7x
topology: tpu7x:2x2x1
jax: 0.10.0
libtpu: 0.0.40
codegen_flags: <defaults>
</compile_context>

<pallas_src>
import math

import jax
import jax.numpy as jnp
from jax.experimental import pallas as pl
from jax.experimental.pallas import tpu as pltpu


# --------------------------- hardware-aware tiling ---------------------------
def _tpu_budget():
    """(VMEM bytes per core, #TensorCores); conservative fallback if unknown."""
    vmem_cap, n_tc = 64 << 20, 1            # v7x per-core numbers (the tightest)
    try:
        info = pltpu.get_tpu_info()
        for name in ("vmem_capacity_bytes", "vmem_bytes", "vmem_size_bytes"):
            v = getattr(info, name, None)
            if v:
                vmem_cap = int(v)
                break
        for name in ("num_tensorcores", "tensorcore_count", "num_cores",
                     "core_count"):
            v = getattr(info, name, None)
            if v:
                n_tc = int(v)
                break
    except Exception:
        pass
    return vmem_cap, max(1, n_tc)


def _choose_row_tile(batch, seq_len, rows_budget, n_tc):
    """Sequences per row tile, under a VMEM row budget.

    Keeps tm = tb*seq_len a multiple of 8 whenever tb < batch, and on
    multi-TensorCore chips rounds the tile count to a multiple of the core
    count so the megacore split stays balanced (single-TC chips are untouched).
    """
    align = 8 // math.gcd(seq_len, 8)        # tb % align == 0  =>  tm % 8 == 0
    tb = max(1, min(batch, rows_budget // max(1, seq_len)))
    if tb < batch:
        tb = max(align, (tb // align) * align)
    tb = min(tb, batch)
    if n_tc >= 2 and batch > 1:
        n_tiles = -(-batch // tb)
        if n_tiles % n_tc:
            tgt_tiles = n_tc * (-(-n_tiles // n_tc))
            cand = -(-batch // tgt_tiles)
            cand = max(align, (cand // align) * align)
            # only rebalance if the smaller tile is still MXU/DMA friendly
            if 0 < cand <= tb and cand * seq_len >= min(256, tb * seq_len):
                tb = cand
    return tb


def _const_block_spec(shape):
    """Full-array, grid-invariant operand: single VMEM buffer (no double buf)."""
    try:
        return pl.BlockSpec(shape, lambda i: (0, 0), pipeline_mode=pl.Buffered(1))
    except TypeError:        # older BlockSpec without pipeline_mode
        return pl.BlockSpec(shape, lambda i: (0, 0))


# ----------------------------- Pallas hot path -------------------------------
def mlp_neck_forward_pallas(srcs2d, slab_plan, weights_c, biases,
                            *, batch, seq_len, compute_dtype, out_dtype):
    """Fused form_input + MLP.

    srcs2d:    list of (M, Hd_k) arrays, M = batch*seq_len, row-major (b, s).
    slab_plan: list of (src_index, shift_n) in feature-concat order; slab j is
               shift(srcs[src_index], n) and multiplies W1 rows
               [sum(prev widths) : +Hd_k].
    weights_c: list of (d_in, d_out) matmul weights in `compute_dtype`.
    biases:    list of (d_out,) float32 biases.
    """
    assert slab_plan, "empty-input fallback (hidden_lb == token_lb == -1) not implemented"
    M = batch * seq_len
    n_src = len(srcs2d)
    L = len(weights_c)
    src_widths = [int(a.shape[1]) for a in srcs2d]
    d0 = int(weights_c[0].shape[0])
    d1 = int(weights_c[0].shape[1])
    H = int(weights_c[-1].shape[1])
    assert sum(src_widths[p] for p, _ in slab_plan) == d0
    biases2d = [b.reshape(1, -1).astype(jnp.float32) for b in biases]

    # ---- group slabs by source; pre-split W1 into per-slab row blocks (free,
    # done outside the kernel -> no in-kernel sublane slicing of bf16 weights).
    row_off, off = [], 0
    for p, _ in slab_plan:
        row_off.append(off)
        off += src_widths[p]
    group_order, groups = [], {}
    for j, (p, n) in enumerate(slab_plan):
        if p not in groups:
            groups[p] = []
            group_order.append(p)
        groups[p].append((n, j))
    w1_slabs, grouped = [], []      # grouped: [(src_idx, [(shift, w1_slab_idx)])]
    for p in group_order:
        entries = []
        for n, j in groups[p]:
            entries.append((n, len(w1_slabs)))
            w1_slabs.append(weights_c[0][row_off[j]:row_off[j] + src_widths[p], :])
        grouped.append((p, entries))
    n_slabs = len(w1_slabs)

    # ---- generation-aware row tiling (VMEM budget, v7x 64MiB is the tightest)
    vmem_cap, n_tc = _tpu_budget()
    itemsz = lambda a: jnp.dtype(a.dtype).itemsize
    stream_row_bytes = 2 * sum(w * itemsz(a) for a, w in zip(srcs2d, src_widths))
    stream_row_bytes += 2 * H * jnp.dtype(out_dtype).itemsize
    d_work = max([d1] + [int(w.shape[1]) for w in weights_c])
    stream_row_bytes += 4 * (d1 + d_work)                 # f32 accumulator / partials
    resident_bytes = sum(int(w.size) * itemsz(w) for w in w1_slabs)
    resident_bytes += sum(int(w.size) * itemsz(w) for w in weights_c[1:])
    resident_bytes += sum(int(b.size) * 4 for b in biases2d)
    usable = max(4 << 20, int(0.70 * vmem_cap) - resident_bytes)
    rows_budget = max(seq_len, usable // max(1, stream_row_bytes))
    tb = _choose_row_tile(batch, seq_len, rows_budget, n_tc)
    tm = tb * seq_len
    grid = (pl.cdiv(M, tm),)
    use_roll = (tm % 8 == 0)        # full-extent tiles with odd M fall back

    est_bytes = resident_bytes + tm * stream_row_bytes + (4 << 20)
    vmem_limit = int(min(0.92 * vmem_cap, max(32 << 20, 1.5 * est_bytes)))

    shifts = sorted({n for _, n in slab_plan if n != 0})
    inv_sqrt2 = 1.0 / math.sqrt(2.0)

    def kernel(*refs):
        src_refs = refs[:n_src]
        w1_refs = refs[n_src:n_src + n_slabs]
        wl_refs = refs[n_src + n_slabs:n_src + n_slabs + (L - 1)]
        b_refs = refs[n_src + n_slabs + (L - 1):n_src + n_slabs + (L - 1) + L]
        o_ref = refs[-1]

        # Validity mask per distinct shift, built once per grid step. Tile
        # start is a multiple of seq_len, so row i sits at position i % seq_len.
        masks = {}
        if shifts:
            s_pos = jax.lax.broadcasted_iota(jnp.int32, (tm, 1), 0) % seq_len
            for n in shifts:
                masks[n] = (s_pos + n >= 0) & (s_pos + n < seq_len)

        def shift_rows(p, n):
            # shift(x, n) @ W == shift(x @ W, n): rotate the f32 partial
            # product (32-bit sublane roll -> XLU slot, no VALU copies) and
            # zero the rows whose shifted position leaves the sequence.
            if use_roll:
                p = pltpu.roll(p, shift=(-n) % tm, axis=0)
            else:
                z = jnp.zeros((abs(n), p.shape[1]), p.dtype)
                p = (jnp.concatenate([p[n:], z], axis=0) if n > 0
                     else jnp.concatenate([z, p[:n]], axis=0))
            return jnp.where(masks[n], p, 0.0)

        # ---- fused form_input + first Linear: one source tile live at a time,
        # bf16 operands straight from VMEM, f32 MXU accumulation.
        h = None
        for src_idx, entries in grouped:
            x = src_refs[src_idx][...].astype(compute_dtype)   # no f32 up-cast
            for n, wi in entries:
                p = jnp.dot(x, w1_refs[wi][...],
                            preferred_element_type=jnp.float32)
                if n != 0:
                    p = shift_rows(p, n)
                # fold the first-layer bias into the first partial product
                h = (p + b_refs[0][...]) if h is None else (h + p)

        # ---- remaining Linear layers, exact-erf GELU in f32 (matches torch
        # nn.GELU default; bf16/tanh GELU would be faster on v6e/v7x but
        # changes numerics vs the reference).
        for l in range(1, L):
            h = 0.5 * h * (1.0 + jax.lax.erf(h * inv_sqrt2))
            h = jnp.dot(h.astype(compute_dtype), wl_refs[l - 1][...],
                        preferred_element_type=jnp.float32) + b_refs[l][...]

        # TODO(synk): for H < 128 the store is lane-masked; a lane-dense
        # (tm//k, k*H) repack needs a sublane->lane reshape whose Mosaic
        # lowering is unreliable, and this kernel reads n_slabs*H per row vs
        # writing H, so it is input- (not store-) bound -- left as-is.
        o_ref[...] = h.astype(o_ref.dtype)

    in_specs = [pl.BlockSpec((tm, w), lambda i: (i, 0)) for w in src_widths]
    in_specs += [_const_block_spec(tuple(w.shape)) for w in w1_slabs]
    in_specs += [_const_block_spec(tuple(w.shape)) for w in weights_c[1:]]
    in_specs += [_const_block_spec(tuple(b.shape)) for b in biases2d]
    out_specs = pl.BlockSpec((tm, H), lambda i: (i, 0))

    return pl.pallas_call(
        kernel,
        out_shape=jax.ShapeDtypeStruct((M, H), out_dtype),
        grid=grid,
        in_specs=in_specs,
        out_specs=out_specs,
        compiler_params=pltpu.CompilerParams(
            dimension_semantics=("parallel",),
            vmem_limit_bytes=vmem_limit),
    )(*srcs2d, *w1_slabs, *weights_c[1:], *biases2d)


# ------------------------- pure-JAX reference glue ---------------------------
def _shift(x, n):
    """shift(x, n)[..., i, :] = x[..., i + n, :] (zero padded); seq axis = -2."""
    if n == 0:
        return x
    if n > 0:
        return jnp.pad(x[..., n:, :], ((0, 0), (0, n), (0, 0)))
    return jnp.pad(x[..., :n, :], ((0, 0), (-n, 0), (0, 0)))


def form_input(hidden_states, tokens, hidden_idxs, hidden_lb, token_lb):
    """Mirrors Neck.form_input: shifted hidden states + shifted tokens, concat dim=2."""
    n_layers = len(hidden_states)
    idxs = sorted([idx % n_layers for idx in hidden_idxs], reverse=True)
    state = [_shift(hidden_states[idx], -lb)
             for lb in range(hidden_lb + 1) for idx in idxs]
    state += [_shift(tokens, 1 - lb) for lb in range(token_lb + 1)]
    return jnp.concatenate(state, axis=2)


# --------------------------------- module ------------------------------------
class MLPNeckPallas:
    """Deterministically-initialised MLPNeck with a fused Pallas hot path."""

    def __init__(self, hidden_size, vocab_size, hidden_idxs, layer_dims,
                 hidden_lb, token_lb, bias=True, key=None,
                 compute_dtype=jnp.bfloat16):
        self.hidden_size = hidden_size
        self.vocab_size = vocab_size
        self.hidden_idxs = hidden_idxs if isinstance(hidden_idxs, list) else [hidden_idxs]
        self.hidden_lb = max(hidden_lb, -1)
        self.token_lb = max(token_lb, -1)
        self.compute_dtype = compute_dtype
        if not isinstance(layer_dims, list):
            layer_dims = [layer_dims]

        d0 = self.input_size()
        dims = [d0] + layer_dims + [hidden_size]
        key = jax.random.PRNGKey(0) if key is None else key
        self.weights, self.biases = [], []
        for i in range(len(dims) - 1):
            key, kw, kb = jax.random.split(key, 3)
            bound = 1.0 / math.sqrt(dims[i])
            # stored (in, out) — transpose of torch's nn.Linear.weight
            w = jax.random.uniform(kw, (dims[i], dims[i + 1]), jnp.float32,
                                   -bound, bound)
            b = (jax.random.uniform(kb, (dims[i + 1],), jnp.float32, -bound, bound)
                 if bias else jnp.zeros((dims[i + 1],), jnp.float32))
            self.weights.append(w)
            self.biases.append(b)
        if len(self.weights) == 1:
            # mirrors nn.init.eye_ / zeros_ for the single-layer case
            self.weights[0] = jnp.eye(dims[0], dims[1], dtype=jnp.float32)
            if bias:
                self.biases[0] = jnp.zeros((dims[1],), jnp.float32)
        # bf16 (compute-dtype) copies of the matmul weights, cast once; the
        # MXU still accumulates in f32 (intentional deviation from all-f32 torch).
        self.weights_c = [w.astype(compute_dtype) for w in self.weights]
        # TODO(synk): reg_loss (Frobenius-norm regulariser) is training-time
        # only and not part of the forward hot path; omitted.

    def input_size(self):
        return max(1, self.hidden_size * (len(self.hidden_idxs) * (self.hidden_lb + 1)
                                          + (self.token_lb + 1)))

    def _slab_plan(self, hidden_states, tokens):
        """Unique source tensors + (source_index, shift) for every concat slab."""
        n_layers = len(hidden_states)
        idxs = sorted([idx % n_layers for idx in self.hidden_idxs], reverse=True)
        keys = [(('h', idx), -lb) for lb in range(self.hidden_lb + 1) for idx in idxs]
        keys += [(('t', 0), 1 - lb) for lb in range(self.token_lb + 1)]
        # TODO(synk): the empty-input fallback (hidden_lb == token_lb == -1 ->
        # zeros(B, S, 1)) of the torch code is not implemented.
        src_pos, srcs, plan = {}, [], []
        for k, n in keys:
            if k not in src_pos:
                src_pos[k] = len(srcs)
                srcs.append(hidden_states[k[1]] if k[0] == 'h' else tokens)
            plan.append((src_pos[k], n))
        return srcs, plan

    def __call__(self, hidden_states, tokens):
        srcs, plan = self._slab_plan(hidden_states, tokens)
        B, S = int(srcs[0].shape[0]), int(srcs[0].shape[1])
        srcs2d = [a.reshape(B * S, a.shape[-1]) for a in srcs]   # free reshape
        out2d = mlp_neck_forward_pallas(
            srcs2d, plan, self.weights_c, self.biases,
            batch=B, seq_len=S,
            compute_dtype=self.compute_dtype, out_dtype=self.compute_dtype)
        return out2d.reshape(B, S, self.hidden_size)

    def reference(self, hidden_states, tokens):
        """Pure-JAX f32 reference (f32 weights, exact-erf GELU)."""
        state = form_input(hidden_states, tokens, self.hidden_idxs,
                           self.hidden_lb, self.token_lb).astype(jnp.float32)
        x = state
        for w, b in zip(self.weights[:-1], self.biases[:-1]):
            x = jax.nn.gelu(x @ w + b, approximate=False)
        return x @ self.weights[-1] + self.biases[-1]


# ----------------------------------- main -------------------------------------
if __name__ == "__main__":
    # Small config: base transformer hidden=32, 4 hidden-state layers, last two
    # layers used, hidden lookback 1, token lookback 0, one intermediate MLP
    # layer of width 48.  Activations arrive in bf16 (as from a bf16 base
    # model) — that is what the kernel streams from HBM.
    B, S, HIDDEN = 2, 16, 32
    N_LAYERS = 4
    VOCAB = 64

    key = jax.random.PRNGKey(0)
    keys = jax.random.split(key, N_LAYERS + 2)
    hidden_states = [
        jax.random.normal(keys[i], (B, S, HIDDEN), jnp.float32).astype(jnp.bfloat16)
        for i in range(N_LAYERS)
    ]
    tokens = jax.random.normal(keys[N_LAYERS], (B, S, HIDDEN),
                               jnp.float32).astype(jnp.bfloat16)

    neck = MLPNeckPallas(hidden_size=HIDDEN, vocab_size=VOCAB,
                         hidden_idxs=[-1, -2], layer_dims=[48],
                         hidden_lb=1, token_lb=0, bias=True,
                         key=keys[N_LAYERS + 1])

    out = neck(hidden_states, tokens)
    jax.block_until_ready(out)

    ref = neck.reference(hidden_states, tokens)
    assert out.shape == (B, S, HIDDEN)
    err = float(jnp.max(jnp.abs(out.astype(jnp.float32) - ref)))
    # bf16 operands with f32 accumulation vs the all-f32 reference
    assert err < 3e-2, f"mismatch vs JAX reference: max abs err = {err}"
    print("KERNEL_OK")
</pallas_src>

<mosaic_0001>
module attributes {stable_mosaic.version = 11 : i64} {
  func.func @kernel(%arg0: i32, %arg1: memref<32x32xbf16, #tpu.memory_space<vmem>>, %arg2: memref<32x32xbf16, #tpu.memory_space<vmem>>, %arg3: memref<32x32xbf16, #tpu.memory_space<vmem>>, %arg4: memref<32x48xbf16, #tpu.memory_space<vmem>>, %arg5: memref<32x48xbf16, #tpu.memory_space<vmem>>, %arg6: memref<32x48xbf16, #tpu.memory_space<vmem>>, %arg7: memref<32x48xbf16, #tpu.memory_space<vmem>>, %arg8: memref<32x48xbf16, #tpu.memory_space<vmem>>, %arg9: memref<48x32xbf16, #tpu.memory_space<vmem>>, %arg10: memref<1x48xf32, #tpu.memory_space<vmem>>, %arg11: memref<1x32xf32, #tpu.memory_space<vmem>>, %arg12: memref<32x32xbf16, #tpu.memory_space<vmem>>) attributes {dimension_semantics = [#tpu.dimension_semantics<parallel>], iteration_bounds = array<i64: 1>, scalar_prefetch = 0 : i64, scratch_operands = 0 : i64, tpu.core_type = #tpu.core_type<tc>, window_params = [{transform_indices = @transform_0, window_bounds = array<i64: 32, 32>}, {transform_indices = @transform_1, window_bounds = array<i64: 32, 32>}, {transform_indices = @transform_2, window_bounds = array<i64: 32, 32>}, {pipeline_mode = #tpu.pipeline_mode<synchronous>, transform_indices = @transform_3, window_bounds = array<i64: 32, 48>}, {pipeline_mode = #tpu.pipeline_mode<synchronous>, transform_indices = @transform_4, window_bounds = array<i64: 32, 48>}, {pipeline_mode = #tpu.pipeline_mode<synchronous>, transform_indices = @transform_5, window_bounds = array<i64: 32, 48>}, {pipeline_mode = #tpu.pipeline_mode<synchronous>, transform_indices = @transform_6, window_bounds = array<i64: 32, 48>}, {pipeline_mode = #tpu.pipeline_mode<synchronous>, transform_indices = @transform_7, window_bounds = array<i64: 32, 48>}, {pipeline_mode = #tpu.pipeline_mode<synchronous>, transform_indices = @transform_8, window_bounds = array<i64: 48, 32>}, {pipeline_mode = #tpu.pipeline_mode<synchronous>, transform_indices = @transform_9, window_bounds = array<i64: 1, 48>}, {pipeline_mode = #tpu.pipeline_mode<synchronous>, transform_indices = @transform_10, window_bounds = array<i64: 1, 32>}, {transform_indices = @transform_11, window_bounds = array<i64: 32, 32>}]} {
    %0 = tpu.iota {dimensions = array<i32: 0>} : vector<32x1xi32>
    %c16_i32 = arith.constant 16 : i32
    %c0_i32 = arith.constant 0 : i32
    %1 = arith.cmpi eq, %c16_i32, %c0_i32 : i32
    %c1_i32 = arith.constant 1 : i32
    %2 = arith.select %1, %c1_i32, %c16_i32 : i32
    %3 = vector.broadcast %2 : i32 to vector<32x1xi32>
    %4 = arith.remsi %0, %3 : vector<32x1xi32>
    %c0_i32_0 = arith.constant 0 : i32
    %5 = vector.broadcast %c0_i32_0 : i32 to vector<32x1xi32>
    %6 = arith.cmpi ne, %4, %5 : vector<32x1xi32>
    %c0_i32_1 = arith.constant 0 : i32
    %7 = vector.broadcast %c0_i32_1 : i32 to vector<32x1xi32>
    %8 = arith.cmpi slt, %4, %7 : vector<32x1xi32>
    %c0_i32_2 = arith.constant 0 : i32
    %9 = arith.cmpi slt, %2, %c0_i32_2 : i32
    %10 = vector.broadcast %9 : i1 to vector<32x1xi1>
    %11 = vector.broadcast %10 : vector<32x1xi1> to vector<32x1xi1>
    %12 = arith.xori %8, %11 : vector<32x1xi1>
    %13 = arith.andi %12, %6 : vector<32x1xi1>
    %14 = vector.broadcast %2 : i32 to vector<32x1xi32>
    %15 = arith.addi %4, %14 : vector<32x1xi32>
    %16 = arith.select %13, %15, %4 : vector<32x1xi1>, vector<32x1xi32>
    %c-1_i32 = arith.constant -1 : i32
    %17 = vector.broadcast %c-1_i32 : i32 to vector<32x1xi32>
    %18 = arith.addi %16, %17 : vector<32x1xi32>
    %c0_i32_3 = arith.constant 0 : i32
    %19 = vector.broadcast %c0_i32_3 : i32 to vector<32x1xi32>
    %20 = arith.cmpi sge, %18, %19 : vector<32x1xi32>
    %c-1_i32_4 = arith.constant -1 : i32
    %21 = vector.broadcast %c-1_i32_4 : i32 to vector<32x1xi32>
    %22 = arith.addi %16, %21 : vector<32x1xi32>
    %c16_i32_5 = arith.constant 16 : i32
    %23 = vector.broadcast %c16_i32_5 : i32 to vector<32x1xi32>
    %24 = arith.cmpi slt, %22, %23 : vector<32x1xi32>
    %25 = arith.andi %20, %24 : vector<32x1xi1>
    %c1_i32_6 = arith.constant 1 : i32
    %26 = vector.broadcast %c1_i32_6 : i32 to vector<32x1xi32>
    %27 = arith.addi %16, %26 : vector<32x1xi32>
    %c0_i32_7 = arith.constant 0 : i32
    %28 = vector.broadcast %c0_i32_7 : i32 to vector<32x1xi32>
    %29 = arith.cmpi sge, %27, %28 : vector<32x1xi32>
    %c1_i32_8 = arith.constant 1 : i32
    %30 = vector.broadcast %c1_i32_8 : i32 to vector<32x1xi32>
    %31 = arith.addi %16, %30 : vector<32x1xi32>
    %c16_i32_9 = arith.constant 16 : i32
    %32 = vector.broadcast %c16_i32_9 : i32 to vector<32x1xi32>
    %33 = arith.cmpi slt, %31, %32 : vector<32x1xi32>
    %34 = arith.andi %29, %33 : vector<32x1xi1>
    %c0 = arith.constant 0 : index
    %c0_10 = arith.constant 0 : index
    %35 = vector.load %arg1[%c0, %c0_10] : memref<32x32xbf16, #tpu.memory_space<vmem>>, vector<32x32xbf16>
    %c0_11 = arith.constant 0 : index
    %c0_12 = arith.constant 0 : index
    %36 = vector.load %arg4[%c0_11, %c0_12] : memref<32x48xbf16, #tpu.memory_space<vmem>>, vector<32x48xbf16>
    %cst = arith.constant dense<0.000000e+00> : vector<32x48xf32>
    %37 = tpu.matmul %35, %36, %cst {dimension_numbers = #tpu.dot_dimension_numbers<[1], [0], [0], [1], [0, 0, 1, 1], [], []>} : vector<32x32xbf16>, vector<32x48xbf16>, vector<32x48xf32> -> vector<32x48xf32>
    %c0_13 = arith.constant 0 : index
    %c0_14 = arith.constant 0 : index
    %38 = vector.load %arg10[%c0_13, %c0_14] : memref<1x48xf32, #tpu.memory_space<vmem>>, vector<1x48xf32>
    %39 = vector.broadcast %38 : vector<1x48xf32> to vector<32x48xf32>
    %40 = arith.addf %37, %39 : vector<32x48xf32>
    %c0_15 = arith.constant 0 : index
    %c0_16 = arith.constant 0 : index
    %41 = vector.load %arg5[%c0_15, %c0_16] : memref<32x48xbf16, #tpu.memory_space<vmem>>, vector<32x48xbf16>
    %cst_17 = arith.constant dense<0.000000e+00> : vector<32x48xf32>
    %42 = tpu.matmul %35, %41, %cst_17 {dimension_numbers = #tpu.dot_dimension_numbers<[1], [0], [0], [1], [0, 0, 1, 1], [], []>} : vector<32x32xbf16>, vector<32x48xbf16>, vector<32x48xf32> -> vector<32x48xf32>
    %c1_i32_18 = arith.constant 1 : i32
    %43 = tpu.dynamic_rotate %42 by %c1_i32_18 dim 0 : vector<32x48xf32>, i32 -> vector<32x48xf32>
    %cst_19 = arith.constant 0.000000e+00 : f32
    %44 = vector.shape_cast %25 : vector<32x1xi1> to vector<32x1xi1>
    %45 = vector.broadcast %44 : vector<32x1xi1> to vector<32x48xi1>
    %46 = vector.broadcast %cst_19 : f32 to vector<32x48xf32>
    %47 = arith.select %45, %43, %46 : vector<32x48xi1>, vector<32x48xf32>
    %48 = arith.addf %40, %47 : vector<32x48xf32>
    %c0_20 = arith.constant 0 : index
    %c0_21 = arith.constant 0 : index
    %49 = vector.load %arg2[%c0_20, %c0_21] : memref<32x32xbf16, #tpu.memory_space<vmem>>, vector<32x32xbf16>
    %c0_22 = arith.constant 0 : index
    %c0_23 = arith.constant 0 : index
    %50 = vector.load %arg6[%c0_22, %c0_23] : memref<32x48xbf16, #tpu.memory_space<vmem>>, vector<32x48xbf16>
    %cst_24 = arith.constant dense<0.000000e+00> : vector<32x48xf32>
    %51 = tpu.matmul %49, %50, %cst_24 {dimension_numbers = #tpu.dot_dimension_numbers<[1], [0], [0], [1], [0, 0, 1, 1], [], []>} : vector<32x32xbf16>, vector<32x48xbf16>, vector<32x48xf32> -> vector<32x48xf32>
    %52 = arith.addf %48, %51 : vector<32x48xf32>
    %c0_25 = arith.constant 0 : index
    %c0_26 = arith.constant 0 : index
    %53 = vector.load %arg7[%c0_25, %c0_26] : memref<32x48xbf16, #tpu.memory_space<vmem>>, vector<32x48xbf16>
    %cst_27 = arith.constant dense<0.000000e+00> : vector<32x48xf32>
    %54 = tpu.matmul %49, %53, %cst_27 {dimension_numbers = #tpu.dot_dimension_numbers<[1], [0], [0], [1], [0, 0, 1, 1], [], []>} : vector<32x32xbf16>, vector<32x48xbf16>, vector<32x48xf32> -> vector<32x48xf32>
    %c1_i32_28 = arith.constant 1 : i32
    %55 = tpu.dynamic_rotate %54 by %c1_i32_28 dim 0 : vector<32x48xf32>, i32 -> vector<32x48xf32>
    %cst_29 = arith.constant 0.000000e+00 : f32
    %56 = vector.shape_cast %25 : vector<32x1xi1> to vector<32x1xi1>
    %57 = vector.broadcast %56 : vector<32x1xi1> to vector<32x48xi1>
    %58 = vector.broadcast %cst_29 : f32 to vector<32x48xf32>
    %59 = arith.select %57, %55, %58 : vector<32x48xi1>, vector<32x48xf32>
    %60 = arith.addf %52, %59 : vector<32x48xf32>
    %c0_30 = arith.constant 0 : index
    %c0_31 = arith.constant 0 : index
    %61 = vector.load %arg3[%c0_30, %c0_31] : memref<32x32xbf16, #tpu.memory_space<vmem>>, vector<32x32xbf16>
    %c0_32 = arith.constant 0 : index
    %c0_33 = arith.constant 0 : index
    %62 = vector.load %arg8[%c0_32, %c0_33] : memref<32x48xbf16, #tpu.memory_space<vmem>>, vector<32x48xbf16>
    %cst_34 = arith.constant dense<0.000000e+00> : vector<32x48xf32>
    %63 = tpu.matmul %61, %62, %cst_34 {dimension_numbers = #tpu.dot_dimension_numbers<[1], [0], [0], [1], [0, 0, 1, 1], [], []>} : vector<32x32xbf16>, vector<32x48xbf16>, vector<32x48xf32> -> vector<32x48xf32>
    %c31_i32 = arith.constant 31 : i32
    %64 = tpu.dynamic_rotate %63 by %c31_i32 dim 0 : vector<32x48xf32>, i32 -> vector<32x48xf32>
    %cst_35 = arith.constant 0.000000e+00 : f32
    %65 = vector.shape_cast %34 : vector<32x1xi1> to vector<32x1xi1>
    %66 = vector.broadcast %65 : vector<32x1xi1> to vector<32x48xi1>
    %67 = vector.broadcast %cst_35 : f32 to vector<32x48xf32>
    %68 = arith.select %66, %64, %67 : vector<32x48xi1>, vector<32x48xf32>
    %69 = arith.addf %60, %68 : vector<32x48xf32>
    %cst_36 = arith.constant 5.000000e-01 : f32
    %70 = vector.broadcast %cst_36 : f32 to vector<32x48xf32>
    %71 = arith.mulf %70, %69 : vector<32x48xf32>
    %cst_37 = arith.constant 0.707106769 : f32
    %72 = vector.broadcast %cst_37 : f32 to vector<32x48xf32>
    %73 = arith.mulf %69, %72 : vector<32x48xf32>
    %74 = math.erf %73 : vector<32x48xf32>
    %cst_38 = arith.constant 1.000000e+00 : f32
    %75 = vector.broadcast %cst_38 : f32 to vector<32x48xf32>
    %76 = arith.addf %75, %74 : vector<32x48xf32>
    %77 = arith.mulf %71, %76 : vector<32x48xf32>
    %78 = arith.truncf %77 : vector<32x48xf32> to vector<32x48xbf16>
    %c0_39 = arith.constant 0 : index
    %c0_40 = arith.constant 0 : index
    %79 = vector.load %arg9[%c0_39, %c0_40] : memref<48x32xbf16, #tpu.memory_space<vmem>>, vector<48x32xbf16>
    %cst_41 = arith.constant dense<0.000000e+00> : vector<32x32xf32>
    %80 = tpu.matmul %78, %79, %cst_41 {dimension_numbers = #tpu.dot_dimension_numbers<[1], [0], [0], [1], [0, 0, 1, 1], [], []>} : vector<32x48xbf16>, vector<48x32xbf16>, vector<32x32xf32> -> vector<32x32xf32>
    %c0_42 = arith.constant 0 : index
    %c0_43 = arith.constant 0 : index
    %81 = vector.load %arg11[%c0_42, %c0_43] : memref<1x32xf32, #tpu.memory_space<vmem>>, vector<1x32xf32>
    %82 = vector.broadcast %81 : vector<1x32xf32> to vector<32x32xf32>
    %83 = arith.addf %80, %82 : vector<32x32xf32>
    %84 = arith.truncf %83 : vector<32x32xf32> to vector<32x32xbf16>
    %c0_44 = arith.constant 0 : index
    %c0_45 = arith.constant 0 : index
    %85 = vector.load %arg12[%c0_44, %c0_45] : memref<32x32xbf16, #tpu.memory_space<vmem>>, vector<32x32xbf16>
    tpu.vector_store %arg12[%c0_44, %c0_45], %84 {strides = array<i32>} : memref<32x32xbf16, #tpu.memory_space<vmem>>, vector<32x32xbf16>,
    return
  }
  func.func @transform_0(%arg0: i32) -> (i32, i32) {
    %c0_i32 = arith.constant 0 : i32
    %c0_i32_0 = arith.constant 0 : i32
    return %arg0, %c0_i32 : i32, i32
  }
  func.func @transform_1(%arg0: i32) -> (i32, i32) {
    %c0_i32 = arith.constant 0 : i32
    %c0_i32_0 = arith.constant 0 : i32
    return %arg0, %c0_i32 : i32, i32
  }
  func.func @transform_2(%arg0: i32) -> (i32, i32) {
    %c0_i32 = arith.constant 0 : i32
    %c0_i32_0 = arith.constant 0 : i32
    return %arg0, %c0_i32 : i32, i32
  }
  func.func @transform_3(%arg0: i32) -> (i32, i32) {
    %c0_i32 = arith.constant 0 : i32
    %c0_i32_0 = arith.constant 0 : i32
    %c0_i32_1 = arith.constant 0 : i32
    return %c0_i32, %c0_i32_0 : i32, i32
  }
  func.func @transform_4(%arg0: i32) -> (i32, i32) {
    %c0_i32 = arith.constant 0 : i32
    %c0_i32_0 = arith.constant 0 : i32
    %c0_i32_1 = arith.constant 0 : i32
    return %c0_i32, %c0_i32_0 : i32, i32
  }
  func.func @transform_5(%arg0: i32) -> (i32, i32) {
    %c0_i32 = arith.constant 0 : i32
    %c0_i32_0 = arith.constant 0 : i32
    %c0_i32_1 = arith.constant 0 : i32
    return %c0_i32, %c0_i32_0 : i32, i32
  }
  func.func @transform_6(%arg0: i32) -> (i32, i32) {
    %c0_i32 = arith.constant 0 : i32
    %c0_i32_0 = arith.constant 0 : i32
    %c0_i32_1 = arith.constant 0 : i32
    return %c0_i32, %c0_i32_0 : i32, i32
  }
  func.func @transform_7(%arg0: i32) -> (i32, i32) {
    %c0_i32 = arith.constant 0 : i32
    %c0_i32_0 = arith.constant 0 : i32
    %c0_i32_1 = arith.constant 0 : i32
    return %c0_i32, %c0_i32_0 : i32, i32
  }
  func.func @transform_8(%arg0: i32) -> (i32, i32) {
    %c0_i32 = arith.constant 0 : i32
    %c0_i32_0 = arith.constant 0 : i32
    %c0_i32_1 = arith.constant 0 : i32
    return %c0_i32, %c0_i32_0 : i32, i32
  }
  func.func @transform_9(%arg0: i32) -> (i32, i32) {
    %c0_i32 = arith.constant 0 : i32
    %c0_i32_0 = arith.constant 0 : i32
    %c0_i32_1 = arith.constant 0 : i32
    return %c0_i32, %c0_i32_0 : i32, i32
  }
  func.func @transform_10(%arg0: i32) -> (i32, i32) {
    %c0_i32 = arith.constant 0 : i32
    %c0_i32_0 = arith.constant 0 : i32
    %c0_i32_1 = arith.constant 0 : i32
    return %c0_i32, %c0_i32_0 : i32, i32
  }
  func.func @transform_11(%arg0: i32) -> (i32, i32) {
    %c0_i32 = arith.constant 0 : i32
    %c0_i32_0 = arith.constant 0 : i32
    return %arg0, %c0_i32 : i32, i32
  }
}

</mosaic_0001>

<llo_original>
// kernel: tpu_custom_call.1
$region0: #{tpu_custom_call.1}
  #allocation0 [shape = 'u32[]', space=smem, size = 0x4, offset = 0x4, fixed_abs, tag = 'smem constant byte address 0x4 - core index']
  #allocation1 [shape = 'u32[144,128]{1,0:T(1,128)}', space=vmem, size = 0x12000, scoped, tag = 'internal scratch']
  %s0 = inlined_call_operand.vmem [shape: bf16[32,32], index: 0, kind: input, shape index: {}]
  %s1 = inlined_call_operand.vmem [shape: bf16[32,32], index: 1, kind: input, shape index: {}]
  %s2 = inlined_call_operand.hbm [shape: bf16[32,32], index: 2, kind: input, shape index: {}]
  %s3 = inlined_call_operand.vmem [shape: bf16[32,48], index: 3, kind: input, shape index: {}]
  %s4 = inlined_call_operand.hbm [shape: bf16[32,48], index: 4, kind: input, shape index: {}]
  %s5 = inlined_call_operand.hbm [shape: bf16[32,48], index: 5, kind: input, shape index: {}]
  %s6 = inlined_call_operand.hbm [shape: bf16[32,48], index: 6, kind: input, shape index: {}]
  %s7 = inlined_call_operand.hbm [shape: bf16[32,48], index: 7, kind: input, shape index: {}]
  %s8 = inlined_call_operand.vmem [shape: bf16[48,32], index: 8, kind: input, shape index: {}]
  %s9 = inlined_call_operand.vmem [shape: f32[1,48], index: 9, kind: input, shape index: {}]
  %s10 = inlined_call_operand.vmem [shape: f32[1,32], index: 10, kind: input, shape index: {}]
  %s11 = inlined_call_operand.hbm [shape: bf16[32,32], index: 11, kind: output, shape index: {}]
  %s12 = sld [smem:[#allocation0]]
  $region74: #{tpu_custom_call.1} parent=0
    _
  %s14 = ssub.s32 1, %s12
  %s15 = scalar_select 0, %s14, %s12
  $region1: #{tpu_custom_call.1} parent=0
    #allocation2 [shape = 'u8[8192]{0}', space=vmem, size = 0x2000, scoped, tag = 'input window, operand 2, single buffered']
    #allocation3 [shape = 's32[1]{0}', space=sflag, size = 0x4, scoped, tag = 'scoped memory for tpu_custom_call.1']
    #allocation4 [shape = 's32[1]{0}', space=sflag, size = 0x4, scoped, tag = 'scoped memory for tpu_custom_call.1']
    #allocation5 [shape = 'u8[8192]{0}', space=vmem, size = 0x2000, scoped, tag = 'input window, operand 4, single buffered']
    #allocation6 [shape = 's32[1]{0}', space=sflag, size = 0x4, scoped, tag = 'scoped memory for tpu_custom_call.1']
    #allocation7 [shape = 'u8[8192]{0}', space=vmem, size = 0x2000, scoped, tag = 'input window, operand 5, single buffered']
    #allocation8 [shape = 'u8[8192]{0}', space=vmem, size = 0x2000, scoped, tag = 'input window, operand 6, single buffered']
    #allocation9 [shape = 's32[1]{0}', space=sflag, size = 0x4, scoped, tag = 'scoped memory for tpu_custom_call.1']
    #allocation10 [shape = 'u8[8192]{0}', space=vmem, size = 0x2000, scoped, tag = 'input window, operand 7, single buffered']
    #allocation11 [shape = 'u8[8192]{0}', space=vmem, size = 0x2000, scoped, tag = 'output window, operand 0, single buffered']
    %16 = vsyncpa [#allocation3], 0
    %17 = vsyncpa [#allocation6], 0
    %18 = vsyncpa [#allocation9], 0
    %19 = vsyncpa [#allocation4], 0
    // Predicated region
    $region2: #{tpu_custom_call.1} parent=1 // pred_check
      _
    $region3: #{tpu_custom_call.1} parent=1 // pred_check_branch
      %21 = sbr.rel (0) target = $region5
    $region4: #{tpu_custom_call.1} parent=1 // pred_region
      _
    $region5: #{tpu_custom_call.1} parent=1 // pred_fallthru
      _
    // Predicated region
    $region6: #{tpu_custom_call.1} parent=1 // pred_check
      _
    $region7: #{tpu_custom_call.1} parent=1 // pred_check_branch
      %23 = sbr.rel (0) target = $region9
    $region8: #{tpu_custom_call.1} parent=1 // pred_region
      _
    $region9: #{tpu_custom_call.1} parent=1 // pred_fallthru
      _
    // Predicated region
    $region10: #{tpu_custom_call.1} parent=1 // pred_check
      _
    $region11: #{tpu_custom_call.1} parent=1 // pred_check_branch
      %25 = sbr.rel (0) target = $region13
    $region12: #{tpu_custom_call.1} parent=1 // pred_region
      %s27 = ssub.s32 256, 256
      %28 = vsyncadd [#allocation3], %s27
      %s29 = sshll.u32 [#allocation2], 4
      %s30 = int_to_ptr.vmem [resolvable:$true] %s29
      %35 = dma.hbm_to_vmem [thread:$0]  %s2, 256, %s30, [#allocation3], 64, 64, 4
    $region13: #{tpu_custom_call.1} parent=1 // pred_fallthru
      _
    // Predicated region
    $region14: #{tpu_custom_call.1} parent=1 // pred_check
      _
    $region15: #{tpu_custom_call.1} parent=1 // pred_check_branch
      %37 = sbr.rel (0) target = $region17
    $region16: #{tpu_custom_call.1} parent=1 // pred_region
      _
    $region17: #{tpu_custom_call.1} parent=1 // pred_fallthru
      _
    // Predicated region
    $region18: #{tpu_custom_call.1} parent=1 // pred_check
      _
    $region19: #{tpu_custom_call.1} parent=1 // pred_check_branch
      %39 = sbr.rel (0) target = $region21
    $region20: #{tpu_custom_call.1} parent=1 // pred_region
      %s41 = ssub.s32 256, 256
      %42 = vsyncadd [#allocation6], %s41
      %s43 = sshll.u32 [#allocation5], 4
      %s44 = int_to_ptr.vmem [resolvable:$true] %s43
      %49 = dma.hbm_to_vmem [thread:$0]  %s4, 256, %s44, [#allocation6], 64, 64, 4
    $region21: #{tpu_custom_call.1} parent=1 // pred_fallthru
      _
    // Predicated region
    $region22: #{tpu_custom_call.1} parent=1 // pred_check
      _
    $region23: #{tpu_custom_call.1} parent=1 // pred_check_branch
      %51 = sbr.rel (0) target = $region25
    $region24: #{tpu_custom_call.1} parent=1 // pred_region
      %s53 = ssub.s32 256, 256
      %54 = vsyncadd [#allocation6], %s53
      %s55 = sshll.u32 [#allocation7], 4
      %s56 = int_to_ptr.vmem [resolvable:$true] %s55
      %61 = dma.hbm_to_vmem [thread:$0]  %s5, 256, %s56, [#allocation6], 64, 64, 4
    $region25: #{tpu_custom_call.1} parent=1 // pred_fallthru
      _
    // Predicated region
    $region26: #{tpu_custom_call.1} parent=1 // pred_check
      _
    $region27: #{tpu_custom_call.1} parent=1 // pred_check_branch
      %63 = sbr.rel (0) target = $region29
    $region28: #{tpu_custom_call.1} parent=1 // pred_region
      %s65 = ssub.s32 256, 256
      %66 = vsyncadd [#allocation9], %s65
      %s67 = sshll.u32 [#allocation8], 4
      %s68 = int_to_ptr.vmem [resolvable:$true] %s67
      %73 = dma.hbm_to_vmem [thread:$0]  %s6, 256, %s68, [#allocation9], 64, 64, 4
    $region29: #{tpu_custom_call.1} parent=1 // pred_fallthru
      _
    // Predicated region
    $region30: #{tpu_custom_call.1} parent=1 // pred_check
      _
    $region31: #{tpu_custom_call.1} parent=1 // pred_check_branch
      %75 = sbr.rel (0) target = $region33
    $region32: #{tpu_custom_call.1} parent=1 // pred_region
      %s77 = ssub.s32 256, 256
      %78 = vsyncadd [#allocation9], %s77
      %s79 = sshll.u32 [#allocation10], 4
      %s80 = int_to_ptr.vmem [resolvable:$true] %s79
      %85 = dma.hbm_to_vmem [thread:$0]  %s7, 256, %s80, [#allocation9], 64, 64, 4
    $region33: #{tpu_custom_call.1} parent=1 // pred_fallthru
      _
    // Predicated region
    $region34: #{tpu_custom_call.1} parent=1 // pred_check
      _
    $region35: #{tpu_custom_call.1} parent=1 // pred_check_branch
      %87 = sbr.rel (0) target = $region37
    $region36: #{tpu_custom_call.1} parent=1 // pred_region
      _
    $region37: #{tpu_custom_call.1} parent=1 // pred_fallthru
      _
    // Predicated region
    $region38: #{tpu_custom_call.1} parent=1 // pred_check
      _
    $region39: #{tpu_custom_call.1} parent=1 // pred_check_branch
      %89 = sbr.rel (0) target = $region41
    $region40: #{tpu_custom_call.1} parent=1 // pred_region
      _
    $region41: #{tpu_custom_call.1} parent=1 // pred_fallthru
      _
    // Predicated region
    $region42: #{tpu_custom_call.1} parent=1 // pred_check
      _
    $region43: #{tpu_custom_call.1} parent=1 // pred_check_branch
      %91 = sbr.rel (0) target = $region45
    $region44: #{tpu_custom_call.1} parent=1 // pred_region
      _
    $region45: #{tpu_custom_call.1} parent=1 // pred_fallthru
      _
    // Predicated region
    $region46: #{tpu_custom_call.1} parent=1 // pred_check
      _
    $region47: #{tpu_custom_call.1} parent=1 // pred_check_branch
      %93 = sbr.rel (0) target = $region49
    $region48: #{tpu_custom_call.1} parent=1 // pred_region
      %94 = dma.done [#allocation3], 256
    $region49: #{tpu_custom_call.1} parent=1 // pred_fallthru
      _
    // Predicated region
    $region50: #{tpu_custom_call.1} parent=1 // pred_check
      _
    $region51: #{tpu_custom_call.1} parent=1 // pred_check_branch
      %96 = sbr.rel (0) target = $region53
    $region52: #{tpu_custom_call.1} parent=1 // pred_region
      %97 = dma.done [#allocation6], 256
    $region53: #{tpu_custom_call.1} parent=1 // pred_fallthru
      _
    // Predicated region
    $region54: #{tpu_custom_call.1} parent=1 // pred_check
      _
    $region55: #{tpu_custom_call.1} parent=1 // pred_check_branch
      %99 = sbr.rel (0) target = $region57
    $region56: #{tpu_custom_call.1} parent=1 // pred_region
      %100 = dma.done [#allocation6], 256
    $region57: #{tpu_custom_call.1} parent=1 // pred_fallthru
      _
    // Predicated region
    $region58: #{tpu_custom_call.1} parent=1 // pred_check
      _
    $region59: #{tpu_custom_call.1} parent=1 // pred_check_branch
      %102 = sbr.rel (0) target = $region61
    $region60: #{tpu_custom_call.1} parent=1 // pred_region
      %103 = dma.done [#allocation9], 256
    $region61: #{tpu_custom_call.1} parent=1 // pred_fallthru
      _
    // Predicated region
    $region62: #{tpu_custom_call.1} parent=1 // pred_check
      _
    $region63: #{tpu_custom_call.1} parent=1 // pred_check_branch
      %105 = sbr.rel (0) target = $region65
    $region64: #{tpu_custom_call.1} parent=1 // pred_region
      %106 = dma.done [#allocation9], 256
    $region65: #{tpu_custom_call.1} parent=1 // pred_fallthru
      _
    %v108 = vlaneseq
    %v109 = vshrl.u32 %v108, 7
    %v110 = vadd.s32 %v109, 8
    %v111 = vadd.s32 %v109, 16
    %v112 = vadd.s32 %v109, 24
    %vm113 = vcmp.lt.s32.totalorder %v109, 0
    %v114 = vsub.s32 0, %v109
    %v115 = vsel %vm113, %v114, %v109
    %v116 = vshrl.u32 %v115, 4
    %v117 = vand.u32 %v115, 15
    %v118 = vsub.s32 0, %v117
    %v119 = vsel %vm113, %v118, %v117
    %vm120 = vcmp.lt.s32.totalorder %v110, 0
    %v121 = vsub.s32 0, %v110
    %v122 = vsel %vm120, %v121, %v110
    %v123 = vshrl.u32 %v122, 4
    %v124 = vand.u32 %v122, 15
    %v125 = vsub.s32 0, %v124
    %v126 = vsel %vm120, %v125, %v124
    %vm127 = vcmp.lt.s32.totalorder %v111, 0
    %v128 = vsub.s32 0, %v111
    %v129 = vsel %vm127, %v128, %v111
    %v130 = vshrl.u32 %v129, 4
    %v131 = vand.u32 %v129, 15
    %v132 = vsub.s32 0, %v131
    %v133 = vsel %vm127, %v132, %v131
    %vm134 = vcmp.lt.s32.totalorder %v112, 0
    %v135 = vsub.s32 0, %v112
    %v136 = vsel %vm134, %v135, %v112
    %v137 = vshrl.u32 %v136, 4
    %v138 = vand.u32 %v136, 15
    %v139 = vsub.s32 0, %v138
    %v140 = vsel %vm134, %v139, %v138
    %vm141 = vcmp.ne.s32.totalorder %v119, 0
    %vm142 = vcmp.ne.s32.totalorder %v126, 0
    %vm143 = vcmp.ne.s32.totalorder %v133, 0
    %vm144 = vcmp.ne.s32.totalorder %v140, 0
    %vm145 = vcmp.lt.s32.totalorder %v119, 0
    %vm146 = vcmp.lt.s32.totalorder %v126, 0
    %vm147 = vcmp.lt.s32.totalorder %v133, 0
    %vm148 = vcmp.lt.s32.totalorder %v140, 0
    %vm149 = vmand %vm145, %vm141
    %vm150 = vmand %vm146, %vm142
    %vm151 = vmand %vm147, %vm143
    %vm152 = vmand %vm148, %vm144
    %v153 = vadd.s32 %v119, 16
    %v154 = vadd.s32 %v126, 16
    %v155 = vadd.s32 %v133, 16
    %v156 = vadd.s32 %v140, 16
    %v157 = vsel %vm149, %v153, %v119
    %v158 = vsel %vm150, %v154, %v126
    %v159 = vsel %vm151, %v155, %v133
    %v160 = vsel %vm152, %v156, %v140
    %v161 = vadd.s32 %v157, 4294967295
    %v162 = vadd.s32 %v158, 4294967295
    %v163 = vadd.s32 %v159, 4294967295
    %v164 = vadd.s32 %v160, 4294967295
    %vm165 = vcmp.ge.s32.totalorder %v161, 0
    %vm166 = vcmp.ge.s32.totalorder %v162, 0
    %vm167 = vcmp.ge.s32.totalorder %v163, 0
    %vm168 = vcmp.ge.s32.totalorder %v164, 0
    %vm169 = vcmp.lt.s32.totalorder %v161, 16
    %vm170 = vcmp.lt.s32.totalorder %v162, 16
    %vm171 = vcmp.lt.s32.totalorder %v163, 16
    %vm172 = vcmp.lt.s32.totalorder %v164, 16
    %vm173 = vmand %vm165, %vm169
    %vm174 = vmand %vm166, %vm170
    %vm175 = vmand %vm167, %vm171
    %vm176 = vmand %vm168, %vm172
    %v177 = vadd.s32 %v157, 1
    %v178 = vadd.s32 %v158, 1
    %v179 = vadd.s32 %v159, 1
    %v180 = vadd.s32 %v160, 1
    %vm181 = vcmp.ge.s32.totalorder %v177, 0
    %vm182 = vcmp.ge.s32.totalorder %v178, 0
    %vm183 = vcmp.ge.s32.totalorder %v179, 0
    %vm184 = vcmp.ge.s32.totalorder %v180, 0
    %vm185 = vcmp.lt.s32.totalorder %v177, 16
    %vm186 = vcmp.lt.s32.totalorder %v178, 16
    %vm187 = vcmp.lt.s32.totalorder %v179, 16
    %vm188 = vcmp.lt.s32.totalorder %v180, 16
    %vm189 = vmand %vm181, %vm185
    %vm190 = vmand %vm182, %vm186
    %vm191 = vmand %vm183, %vm187
    %vm192 = vmand %vm184, %vm188
    %v193 = vld [vmem:[%s0] sm:$0xf]
    %v194 = vld [vmem:[%s0 + $0x4] sm:$0xf]
    %v195 = vld [vmem:[%s0 + $0x8] sm:$0xf]
    %v196 = vld [vmem:[%s0 + $0xc] sm:$0xf]
    %v197 = vld [vmem:[%s3] sm:$0xf]
    %v198 = vld [vmem:[%s3 + $0x4] sm:$0xf]
    %v199 = vld [vmem:[%s3 + $0x8] sm:$0xf]
    %v200 = vld [vmem:[%s3 + $0xc] sm:$0xf]
    %v201 = vld [vmem:[%s9] sm:$0x1]
    %v203 = vlaneseq
    %v204 = vshrl.u32 %v203, 7
    %v205 = vsub.s32 0, %v204
    %v206 = vrot.slane %v201, %v205
    %v212 = vunpack.c.l.b16 %v193
    %v213 = vunpack.c.l.b16 %v194
    %v214 = vunpack.c.l.b16 %v195
    %v215 = vunpack.c.l.b16 %v196
    %v216 = vpack.c.b16 %v213, %v212
    %v217 = vpack.c.b16 %v215, %v214
    %v222 = vunpack.c.l.b16 %v197
    %v223 = vunpack.c.l.b16 %v198
    %v224 = vunpack.c.l.b16 %v199
    %v225 = vunpack.c.l.b16 %v200
    %v226 = vpack.c.b16 %v223, %v222
    %v227 = vpack.c.b16 %v225, %v224
    %vm230 = vcmask 261120
    %v232 = vsel %vm230, %v216, 0
    %v235 = vsel %vm230, %v217, 0
    %237 = vmatprep.subr.bf16.mxu0 0
    %238 = vmatpush1.bf16.msra.mxu0 %v226
    %239 = vmatprep.subr.bf16.mxu0 0
    %240 = vmatpush1.bf16.msra.mxu0 %v227
    %241 = vmatprep.subr.bf16.mxu0 0
    %242 = vmatpush1.bf16.msra.mxu0 0
    %243 = vmatprep.subr.bf16.mxu0 0
    %244 = vmatpush1.bf16.msra.mxu0 0
    %245 = vmatprep.subr.bf16.mxu0 0
    %246 = vmatpush1.bf16.msra.mxu0 0
    %247 = vmatprep.subr.bf16.mxu0 0
    %248 = vmatpush1.bf16.msra.mxu0 0
    %249 = vmatprep.subr.bf16.mxu0 0
    %250 = vmatpush1.bf16.msra.mxu0 0
    %251 = vmatprep.subr.bf16.mxu0 0
    %252 = vmatpush1.bf16.msra.mxu0 0
    %253 = vmatprep.subr.bf16.mxu0 0
    %254 = vmatpush1.bf16.msra.mxu0 0
    %255 = vmatprep.subr.bf16.mxu0 0
    %256 = vmatpush1.bf16.msra.mxu0 0
    %257 = vmatprep.subr.bf16.mxu0 0
    %258 = vmatpush1.bf16.msra.mxu0 0
    %259 = vmatprep.subr.bf16.mxu0 0
    %260 = vmatpush1.bf16.msra.mxu0 0
    %261 = vmatprep.subr.bf16.mxu0 0
    %262 = vmatpush1.bf16.msra.mxu0 0
    %263 = vmatprep.subr.bf16.mxu0 0
    %264 = vmatpush1.bf16.msra.mxu0 0
    %265 = vmatprep.subr.bf16.mxu0 0
    %266 = vmatpush1.bf16.msra.mxu0 0
    %267 = vmatprep.subr.bf16.mxu0 0
    %268 = vmatpush1.bf16.msra.mxu0 0
    %269 = vmatprep.mubr.bf16.mxu0 0
    %270 = vmatmul.mubr.bf16.gmra.mrb[0].mxu0 %v232
    %v271 = vpop.f32.mrb[0].mxu0
    %v272 = vadd.f32 %v206, %v271
    %v273 = vpop.f32.mrb[0].mxu0
    %v274 = vpop.f32.mrb[0].mxu0
    %v275 = vadd.f32 %v206, %v274
    %v276 = vpop.f32.mrb[0].mxu0
    %277 = vmatprep.mubr.bf16.mxu0 0
    %278 = vmatmul.mubr.bf16.gmra.mrb[0].mxu0 %v235
    %v279 = vpop.f32.mrb[0].mxu0
    %v280 = vadd.f32 %v206, %v279
    %v281 = vpop.f32.mrb[0].mxu0
    %v282 = vpop.f32.mrb[0].mxu0
    %v283 = vadd.f32 %v206, %v282
    %v284 = vpop.f32.mrb[0].mxu0
    %285 = vdwg.mxu0
    %v286 = vld [vmem:[#allocation5] sm:$0xf]
    %v287 = vld [vmem:[#allocation5 + $0x4] sm:$0xf]
    %v288 = vld [vmem:[#allocation5 + $0x8] sm:$0xf]
    %v289 = vld [vmem:[#allocation5 + $0xc] sm:$0xf]
    %v294 = vunpack.c.l.b16 %v286
    %v295 = vunpack.c.l.b16 %v287
    %v296 = vunpack.c.l.b16 %v288
    %v297 = vunpack.c.l.b16 %v289
    %v298 = vpack.c.b16 %v295, %v294
    %v299 = vpack.c.b16 %v297, %v296
    %302 = vmatprep.subr.bf16.mxu0 0
    %303 = vmatpush1.bf16.msra.mxu0 %v298
    %304 = vmatprep.subr.bf16.mxu0 0
    %305 = vmatpush1.bf16.msra.mxu0 %v299
    %306 = vmatprep.subr.bf16.mxu0 0
    %307 = vmatpush1.bf16.msra.mxu0 0
    %308 = vmatprep.subr.bf16.mxu0 0
    %309 = vmatpush1.bf16.msra.mxu0 0
    %310 = vmatprep.subr.bf16.mxu0 0
    %311 = vmatpush1.bf16.msra.mxu0 0
    %312 = vmatprep.subr.bf16.mxu0 0
    %313 = vmatpush1.bf16.msra.mxu0 0
    %314 = vmatprep.subr.bf16.mxu0 0
    %315 = vmatpush1.bf16.msra.mxu0 0
    %316 = vmatprep.subr.bf16.mxu0 0
    %317 = vmatpush1.bf16.msra.mxu0 0
    %318 = vmatprep.subr.bf16.mxu0 0
    %319 = vmatpush1.bf16.msra.mxu0 0
    %320 = vmatprep.subr.bf16.mxu0 0
    %321 = vmatpush1.bf16.msra.mxu0 0
    %322 = vmatprep.subr.bf16.mxu0 0
    %323 = vmatpush1.bf16.msra.mxu0 0
    %324 = vmatprep.subr.bf16.mxu0 0
    %325 = vmatpush1.bf16.msra.mxu0 0
    %326 = vmatprep.subr.bf16.mxu0 0
    %327 = vmatpush1.bf16.msra.mxu0 0
    %328 = vmatprep.subr.bf16.mxu0 0
    %329 = vmatpush1.bf16.msra.mxu0 0
    %330 = vmatprep.subr.bf16.mxu0 0
    %331 = vmatpush1.bf16.msra.mxu0 0
    %332 = vmatprep.subr.bf16.mxu0 0
    %333 = vmatpush1.bf16.msra.mxu0 0
    %334 = vmatprep.mubr.bf16.mxu0 0
    %335 = vmatmul.mubr.bf16.gmra.mrb[0].mxu0 %v232
    %v336 = vpop.f32.mrb[0].mxu0
    %v337 = vadd.f32 0.0, %v336
    %v338 = vpop.f32.mrb[0].mxu0
    %v339 = vpop.f32.mrb[0].mxu0
    %v340 = vadd.f32 0.0, %v339
    %v341 = vpop.f32.mrb[0].mxu0
    %342 = vmatprep.mubr.bf16.mxu0 0
    %343 = vmatmul.mubr.bf16.gmra.mrb[0].mxu0 %v235
    %v344 = vpop.f32.mrb[0].mxu0
    %v345 = vadd.f32 0.0, %v344
    %v346 = vpop.f32.mrb[0].mxu0
    %v347 = vpop.f32.mrb[0].mxu0
    %v348 = vadd.f32 0.0, %v347
    %v349 = vpop.f32.mrb[0].mxu0
    %350 = vdwg.mxu0
    %v351 = vrot.slane %v337, 7
    %v352 = vrot.slane %v340, 7
    %v353 = vrot.slane %v345, 7
    %v354 = vrot.slane %v348, 7
    %vm355 = vcmp.lt.s32.totalorder %v109, 1
    %v356 = vsel %vm355, %v353, %v354
    %v357 = vsel %vm355, %v352, %v353
    %v358 = vsel %vm355, %v351, %v352
    %v359 = vsel %vm355, %v354, %v351
    %v360 = vsel %vm173, 1, 0
    %v361 = vsel %vm174, 1, 0
    %v362 = vsel %vm175, 1, 0
    %v363 = vsel %vm176, 1, 0
    %vm364 = vcmp.eq.s32.totalorder %v360, 1
    %vm365 = vcmp.eq.s32.totalorder %v361, 1
    %vm366 = vcmp.eq.s32.totalorder %v362, 1
    %vm367 = vcmp.eq.s32.totalorder %v363, 1
    %v368 = vsel %vm364, %v359, 0.0
    %v369 = vsel %vm365, %v358, 0.0
    %v370 = vsel %vm366, %v357, 0.0
    %v371 = vsel %vm367, %v356, 0.0
    %v372 = vadd.f32 %v272, %v368
    %v373 = vadd.f32 %v275, %v369
    %v374 = vadd.f32 %v280, %v370
    %v375 = vadd.f32 %v283, %v371
    %v376 = vld [vmem:[%s1] sm:$0xf]
    %v377 = vld [vmem:[%s1 + $0x4] sm:$0xf]
    %v378 = vld [vmem:[%s1 + $0x8] sm:$0xf]
    %v379 = vld [vmem:[%s1 + $0xc] sm:$0xf]
    %v380 = vld [vmem:[#allocation7] sm:$0xf]
    %v381 = vld [vmem:[#allocation7 + $0x4] sm:$0xf]
    %v382 = vld [vmem:[#allocation7 + $0x8] sm:$0xf]
    %v383 = vld [vmem:[#allocation7 + $0xc] sm:$0xf]
    %v388 = vunpack.c.l.b16 %v376
    %v389 = vunpack.c.l.b16 %v377
    %v390 = vunpack.c.l.b16 %v378
    %v391 = vunpack.c.l.b16 %v379
    %v392 = vpack.c.b16 %v389, %v388
    %v393 = vpack.c.b16 %v391, %v390
    %v398 = vunpack.c.l.b16 %v380
    %v399 = vunpack.c.l.b16 %v381
    %v400 = vunpack.c.l.b16 %v382
    %v401 = vunpack.c.l.b16 %v383
    %v402 = vpack.c.b16 %v399, %v398
    %v403 = vpack.c.b16 %v401, %v400
    %v407 = vsel %vm230, %v392, 0
    %v410 = vsel %vm230, %v393, 0
    %412 = vmatprep.subr.bf16.mxu0 0
    %413 = vmatpush1.bf16.msra.mxu0 %v402
    %414 = vmatprep.subr.bf16.mxu0 0
    %415 = vmatpush1.bf16.msra.mxu0 %v403
    %416 = vmatprep.subr.bf16.mxu0 0
    %417 = vmatpush1.bf16.msra.mxu0 0
    %418 = vmatprep.subr.bf16.mxu0 0
    %419 = vmatpush1.bf16.msra.mxu0 0
    %420 = vmatprep.subr.bf16.mxu0 0
    %421 = vmatpush1.bf16.msra.mxu0 0
    %422 = vmatprep.subr.bf16.mxu0 0
    %423 = vmatpush1.bf16.msra.mxu0 0
    %424 = vmatprep.subr.bf16.mxu0 0
    %425 = vmatpush1.bf16.msra.mxu0 0
    %426 = vmatprep.subr.bf16.mxu0 0
    %427 = vmatpush1.bf16.msra.mxu0 0
    %428 = vmatprep.subr.bf16.mxu0 0
    %429 = vmatpush1.bf16.msra.mxu0 0
    %430 = vmatprep.subr.bf16.mxu0 0
    %431 = vmatpush1.bf16.msra.mxu0 0
    %432 = vmatprep.subr.bf16.mxu0 0
    %433 = vmatpush1.bf16.msra.mxu0 0
    %434 = vmatprep.subr.bf16.mxu0 0
    %435 = vmatpush1.bf16.msra.mxu0 0
    %436 = vmatprep.subr.bf16.mxu0 0
    %437 = vmatpush1.bf16.msra.mxu0 0
    %438 = vmatprep.subr.bf16.mxu0 0
    %439 = vmatpush1.bf16.msra.mxu0 0
    %440 = vmatprep.subr.bf16.mxu0 0
    %441 = vmatpush1.bf16.msra.mxu0 0
    %442 = vmatprep.subr.bf16.mxu0 0
    %443 = vmatpush1.bf16.msra.mxu0 0
    %444 = vmatprep.mubr.bf16.mxu0 0
    %445 = vmatmul.mubr.bf16.gmra.mrb[0].mxu0 %v407
    %v446 = vpop.f32.mrb[0].mxu0
    %v447 = vadd.f32 0.0, %v446
    %v448 = vpop.f32.mrb[0].mxu0
    %v449 = vpop.f32.mrb[0].mxu0
    %v450 = vadd.f32 0.0, %v449
    %v451 = vpop.f32.mrb[0].mxu0
    %452 = vmatprep.mubr.bf16.mxu0 0
    %453 = vmatmul.mubr.bf16.gmra.mrb[0].mxu0 %v410
    %v454 = vpop.f32.mrb[0].mxu0
    %v455 = vadd.f32 0.0, %v454
    %v456 = vpop.f32.mrb[0].mxu0
    %v457 = vpop.f32.mrb[0].mxu0
    %v458 = vadd.f32 0.0, %v457
    %v459 = vpop.f32.mrb[0].mxu0
    %460 = vdwg.mxu0
    %v461 = vadd.f32 %v372, %v447
    %v462 = vadd.f32 %v373, %v450
    %v463 = vadd.f32 %v374, %v455
    %v464 = vadd.f32 %v375, %v458
    %v465 = vld [vmem:[#allocation8] sm:$0xf]
    %v466 = vld [vmem:[#allocation8 + $0x4] sm:$0xf]
    %v467 = vld [vmem:[#allocation8 + $0x8] sm:$0xf]
    %v468 = vld [vmem:[#allocation8 + $0xc] sm:$0xf]
    %v473 = vunpack.c.l.b16 %v465
    %v474 = vunpack.c.l.b16 %v466
    %v475 = vunpack.c.l.b16 %v467
    %v476 = vunpack.c.l.b16 %v468
    %v477 = vpack.c.b16 %v474, %v473
    %v478 = vpack.c.b16 %v476, %v475
    %481 = vmatprep.subr.bf16.mxu0 0
    %482 = vmatpush1.bf16.msra.mxu0 %v477
    %483 = vmatprep.subr.bf16.mxu0 0
    %484 = vmatpush1.bf16.msra.mxu0 %v478
    %485 = vmatprep.subr.bf16.mxu0 0
    %486 = vmatpush1.bf16.msra.mxu0 0
    %487 = vmatprep.subr.bf16.mxu0 0
    %488 = vmatpush1.bf16.msra.mxu0 0
    %489 = vmatprep.subr.bf16.mxu0 0
    %490 = vmatpush1.bf16.msra.mxu0 0
    %491 = vmatprep.subr.bf16.mxu0 0
    %492 = vmatpush1.bf16.msra.mxu0 0
    %493 = vmatprep.subr.bf16.mxu0 0
    %494 = vmatpush1.bf16.msra.mxu0 0
    %495 = vmatprep.subr.bf16.mxu0 0
    %496 = vmatpush1.bf16.msra.mxu0 0
    %497 = vmatprep.subr.bf16.mxu0 0
    %498 = vmatpush1.bf16.msra.mxu0 0
    %499 = vmatprep.subr.bf16.mxu0 0
    %500 = vmatpush1.bf16.msra.mxu0 0
    %501 = vmatprep.subr.bf16.mxu0 0
    %502 = vmatpush1.bf16.msra.mxu0 0
    %503 = vmatprep.subr.bf16.mxu0 0
    %504 = vmatpush1.bf16.msra.mxu0 0
    %505 = vmatprep.subr.bf16.mxu0 0
    %506 = vmatpush1.bf16.msra.mxu0 0
    %507 = vmatprep.subr.bf16.mxu0 0
    %508 = vmatpush1.bf16.msra.mxu0 0
    %509 = vmatprep.subr.bf16.mxu0 0
    %510 = vmatpush1.bf16.msra.mxu0 0
    %511 = vmatprep.subr.bf16.mxu0 0
    %512 = vmatpush1.bf16.msra.mxu0 0
    %513 = vmatprep.mubr.bf16.mxu0 0
    %514 = vmatmul.mubr.bf16.gmra.mrb[0].mxu0 %v407
    %v515 = vpop.f32.mrb[0].mxu0
    %v516 = vadd.f32 0.0, %v515
    %v517 = vpop.f32.mrb[0].mxu0
    %v518 = vpop.f32.mrb[0].mxu0
    %v519 = vadd.f32 0.0, %v518
    %v520 = vpop.f32.mrb[0].mxu0
    %521 = vmatprep.mubr.bf16.mxu0 0
    %522 = vmatmul.mubr.bf16.gmra.mrb[0].mxu0 %v410
    %v523 = vpop.f32.mrb[0].mxu0
    %v524 = vadd.f32 0.0, %v523
    %v525 = vpop.f32.mrb[0].mxu0
    %v526 = vpop.f32.mrb[0].mxu0
    %v527 = vadd.f32 0.0, %v526
    %v528 = vpop.f32.mrb[0].mxu0
    %529 = vdwg.mxu0
    %v530 = vrot.slane %v516, 7
    %v531 = vrot.slane %v519, 7
    %v532 = vrot.slane %v524, 7
    %v533 = vrot.slane %v527, 7
    %v534 = vsel %vm355, %v532, %v533
    %v535 = vsel %vm355, %v531, %v532
    %v536 = vsel %vm355, %v530, %v531
    %v537 = vsel %vm355, %v533, %v530
    %v538 = vsel %vm364, %v537, 0.0
    %v539 = vsel %vm365, %v536, 0.0
    %v540 = vsel %vm366, %v535, 0.0
    %v541 = vsel %vm367, %v534, 0.0
    %v542 = vadd.f32 %v461, %v538
    %v543 = vadd.f32 %v462, %v539
    %v544 = vadd.f32 %v463, %v540
    %v545 = vadd.f32 %v464, %v541
    %v546 = vld [vmem:[#allocation2] sm:$0xf]
    %v547 = vld [vmem:[#allocation2 + $0x4] sm:$0xf]
    %v548 = vld [vmem:[#allocation2 + $0x8] sm:$0xf]
    %v549 = vld [vmem:[#allocation2 + $0xc] sm:$0xf]
    %v550 = vld [vmem:[#allocation10] sm:$0xf]
    %v551 = vld [vmem:[#allocation10 + $0x4] sm:$0xf]
    %v552 = vld [vmem:[#allocation10 + $0x8] sm:$0xf]
    %v553 = vld [vmem:[#allocation10 + $0xc] sm:$0xf]
    %v558 = vunpack.c.l.b16 %v546
    %v559 = vunpack.c.l.b16 %v547
    %v560 = vunpack.c.l.b16 %v548
    %v561 = vunpack.c.l.b16 %v549
    %v562 = vpack.c.b16 %v559, %v558
    %v563 = vpack.c.b16 %v561, %v560
    %v568 = vunpack.c.l.b16 %v550
    %v569 = vunpack.c.l.b16 %v551
    %v570 = vunpack.c.l.b16 %v552
    %v571 = vunpack.c.l.b16 %v553
    %v572 = vpack.c.b16 %v569, %v568
    %v573 = vpack.c.b16 %v571, %v570
    %v577 = vsel %vm230, %v562, 0
    %v580 = vsel %vm230, %v563, 0
    %582 = vmatprep.subr.bf16.mxu0 0
    %583 = vmatpush1.bf16.msra.mxu0 %v572
    %584 = vmatprep.subr.bf16.mxu0 0
    %585 = vmatpush1.bf16.msra.mxu0 %v573
    %586 = vmatprep.subr.bf16.mxu0 0
    %587 = vmatpush1.bf16.msra.mxu0 0
    %588 = vmatprep.subr.bf16.mxu0 0
    %589 = vmatpush1.bf16.msra.mxu0 0
    %590 = vmatprep.subr.bf16.mxu0 0
    %591 = vmatpush1.bf16.msra.mxu0 0
    %592 = vmatprep.subr.bf16.mxu0 0
    %593 = vmatpush1.bf16.msra.mxu0 0
    %594 = vmatprep.subr.bf16.mxu0 0
    %595 = vmatpush1.bf16.msra.mxu0 0
    %596 = vmatprep.subr.bf16.mxu0 0
    %597 = vmatpush1.bf16.msra.mxu0 0
    %598 = vmatprep.subr.bf16.mxu0 0
    %599 = vmatpush1.bf16.msra.mxu0 0
    %600 = vmatprep.subr.bf16.mxu0 0
    %601 = vmatpush1.bf16.msra.mxu0 0
    %602 = vmatprep.subr.bf16.mxu0 0
    %603 = vmatpush1.bf16.msra.mxu0 0
    %604 = vmatprep.subr.bf16.mxu0 0
    %605 = vmatpush1.bf16.msra.mxu0 0
    %606 = vmatprep.subr.bf16.mxu0 0
    %607 = vmatpush1.bf16.msra.mxu0 0
    %608 = vmatprep.subr.bf16.mxu0 0
    %609 = vmatpush1.bf16.msra.mxu0 0
    %610 = vmatprep.subr.bf16.mxu0 0
    %611 = vmatpush1.bf16.msra.mxu0 0
    %612 = vmatprep.subr.bf16.mxu0 0
    %613 = vmatpush1.bf16.msra.mxu0 0
    %614 = vmatprep.mubr.bf16.mxu0 0
    %615 = vmatmul.mubr.bf16.gmra.mrb[0].mxu0 %v577
    %v616 = vpop.f32.mrb[0].mxu0
    %v617 = vadd.f32 0.0, %v616
    %v618 = vpop.f32.mrb[0].mxu0
    %v619 = vpop.f32.mrb[0].mxu0
    %v620 = vadd.f32 0.0, %v619
    %v621 = vpop.f32.mrb[0].mxu0
    %622 = vmatprep.mubr.bf16.mxu0 0
    %623 = vmatmul.mubr.bf16.gmra.mrb[0].mxu0 %v580
    %v624 = vpop.f32.mrb[0].mxu0
    %v625 = vadd.f32 0.0, %v624
    %v626 = vpop.f32.mrb[0].mxu0
    %v627 = vpop.f32.mrb[0].mxu0
    %v628 = vadd.f32 0.0, %v627
    %v629 = vpop.f32.mrb[0].mxu0
    %630 = vdwg.mxu0
    %v631 = vrot.slane %v617, 1
    %v632 = vrot.slane %v620, 1
    %v633 = vrot.slane %v625, 1
    %v634 = vrot.slane %v628, 1
    %vm635 = vcmp.lt.s32.totalorder %v109, 7
    %v636 = vsel %vm635, %v633, %v634
    %v637 = vsel %vm635, %v632, %v633
    %v638 = vsel %vm635, %v631, %v632
    %v639 = vsel %vm635, %v634, %v631
    %v640 = vsel %vm189, 1, 0
    %v641 = vsel %vm190, 1, 0
    %v642 = vsel %vm191, 1, 0
    %v643 = vsel %vm192, 1, 0
    %vm644 = vcmp.eq.s32.totalorder %v640, 1
    %vm645 = vcmp.eq.s32.totalorder %v641, 1
    %vm646 = vcmp.eq.s32.totalorder %v642, 1
    %vm647 = vcmp.eq.s32.totalorder %v643, 1
    %v648 = vsel %vm644, %v638, 0.0
    %v649 = vsel %vm645, %v637, 0.0
    %v650 = vsel %vm646, %v636, 0.0
    %v651 = vsel %vm647, %v639, 0.0
    %v652 = vadd.f32 %v542, %v648
    %v653 = vadd.f32 %v543, %v649
    %v654 = vadd.f32 %v544, %v650
    %v655 = vadd.f32 %v545, %v651
    %v656 = vmul.f32 %v652, 0.5
    %v657 = vmul.f32 %v653, 0.5
    %v658 = vmul.f32 %v654, 0.5
    %v659 = vmul.f32 %v655, 0.5
    %v660 = vmul.f32 %v652, 0.70710677
    %v661 = vmul.f32 %v653, 0.70710677
    %v662 = vmul.f32 %v654, 0.70710677
    %v663 = vmul.f32 %v655, 0.70710677
    %v664 = verf.f32.pop %v660
    %v665 = verf.f32.pop %v661
    %v666 = verf.f32.pop %v662
    %v667 = verf.f32.pop %v663
    %v668 = vadd.f32 %v664, 1.0
    %v669 = vadd.f32 %v665, 1.0
    %v670 = vadd.f32 %v666, 1.0
    %v671 = vadd.f32 %v667, 1.0
    %v672 = vmul.f32 %v656, %v668
    %v673 = vmul.f32 %v657, %v669
    %v674 = vmul.f32 %v658, %v670
    %v675 = vmul.f32 %v659, %v671
    %v676 = vpack.c.bf16 %v673, %v672
    %v677 = vpack.c.bf16 %v675, %v674
    %v678 = vld [vmem:[%s8] sm:$0xf]
    %v679 = vld [vmem:[%s8 + $0x4] sm:$0xf]
    %v680 = vld [vmem:[%s8 + $0x8] sm:$0xf]
    %v681 = vld [vmem:[%s8 + $0xc] sm:$0xf]
    %v682 = vld [vmem:[%s8 + $0x10] sm:$0xf]
    %v683 = vld [vmem:[%s8 + $0x14] sm:$0xf]
    %v684 = vld [vmem:[%s10] sm:$0x1]
    %v686 = vlaneseq
    %v687 = vshrl.u32 %v686, 7
    %v688 = vsub.s32 0, %v687
    %v689 = vrot.slane %v684, %v688
    %v697 = vunpack.c.l.b16 %v678
    %v698 = vunpack.c.l.b16 %v679
    %v699 = vunpack.c.l.b16 %v680
    %v700 = vunpack.c.l.b16 %v681
    %v701 = vunpack.c.l.b16 %v682
    %v702 = vunpack.c.l.b16 %v683
    %v703 = vpack.c.b16 %v698, %v697
    %v704 = vpack.c.b16 %v700, %v699
    %v705 = vpack.c.b16 %v702, %v701
    %vm709 = vcmask 392192
    %v711 = vsel %vm709, %v676, 0
    %v714 = vsel %vm709, %v677, 0
    %716 = vmatprep.subr.bf16.mxu0 0
    %717 = vmatpush1.bf16.msra.mxu0 %v703
    %718 = vmatprep.subr.bf16.mxu0 0
    %719 = vmatpush1.bf16.msra.mxu0 %v704
    %720 = vmatprep.subr.bf16.mxu0 0
    %721 = vmatpush1.bf16.msra.mxu0 %v705
    %722 = vmatprep.subr.bf16.mxu0 0
    %723 = vmatpush1.bf16.msra.mxu0 0
    %724 = vmatprep.subr.bf16.mxu0 0
    %725 = vmatpush1.bf16.msra.mxu0 0
    %726 = vmatprep.subr.bf16.mxu0 0
    %727 = vmatpush1.bf16.msra.mxu0 0
    %728 = vmatprep.subr.bf16.mxu0 0
    %729 = vmatpush1.bf16.msra.mxu0 0
    %730 = vmatprep.subr.bf16.mxu0 0
    %731 = vmatpush1.bf16.msra.mxu0 0
    %732 = vmatprep.subr.bf16.mxu0 0
    %733 = vmatpush1.bf16.msra.mxu0 0
    %734 = vmatprep.subr.bf16.mxu0 0
    %735 = vmatpush1.bf16.msra.mxu0 0
    %736 = vmatprep.subr.bf16.mxu0 0
    %737 = vmatpush1.bf16.msra.mxu0 0
    %738 = vmatprep.subr.bf16.mxu0 0
    %739 = vmatpush1.bf16.msra.mxu0 0
    %740 = vmatprep.subr.bf16.mxu0 0
    %741 = vmatpush1.bf16.msra.mxu0 0
    %742 = vmatprep.subr.bf16.mxu0 0
    %743 = vmatpush1.bf16.msra.mxu0 0
    %744 = vmatprep.subr.bf16.mxu0 0
    %745 = vmatpush1.bf16.msra.mxu0 0
    %746 = vmatprep.subr.bf16.mxu0 0
    %747 = vmatpush1.bf16.msra.mxu0 0
    %748 = vmatprep.mubr.bf16.mxu0 0
    %749 = vmatmul.mubr.bf16.gmra.mrb[0].mxu0 %v711
    %v750 = vpop.f32.mrb[0].mxu0
    %v751 = vadd.f32 %v689, %v750
    %v752 = vpop.f32.mrb[0].mxu0
    %v753 = vpop.f32.mrb[0].mxu0
    %v754 = vadd.f32 %v689, %v753
    %v755 = vpop.f32.mrb[0].mxu0
    %756 = vmatprep.mubr.bf16.mxu0 0
    %757 = vmatmul.mubr.bf16.gmra.mrb[0].mxu0 %v714
    %v758 = vpop.f32.mrb[0].mxu0
    %v759 = vadd.f32 %v689, %v758
    %v760 = vpop.f32.mrb[0].mxu0
    %v761 = vpop.f32.mrb[0].mxu0
    %v762 = vadd.f32 %v689, %v761
    %v763 = vpop.f32.mrb[0].mxu0
    %764 = vdwg.mxu0
    %v765 = vpack.c.bf16 %v754, %v751
    %v766 = vpack.c.bf16 %v762, %v759
    %v769 = vunpack.c.l.b16 %v765
    %v770 = vunpack.c.h.b16 %v765
    %v771 = vunpack.c.l.b16 %v766
    %v772 = vunpack.c.h.b16 %v766
    %v773 = vpack.c.b16 %v769, %v769
    %v774 = vpack.c.b16 %v770, %v770
    %v775 = vpack.c.b16 %v771, %v771
    %v776 = vpack.c.b16 %v772, %v772
    %vm781 = vcmask 257024
    %782 = vst.msk [vmem:[#allocation11] sm:$0xf] %vm781, %v773
    %783 = vst.msk [vmem:[#allocation11 + $0x4] sm:$0xf] %vm781, %v774
    %784 = vst.msk [vmem:[#allocation11 + $0x8] sm:$0xf] %vm781, %v775
    %785 = vst.msk [vmem:[#allocation11 + $0xc] sm:$0xf] %vm781, %v776
    // Predicated region
    $region66: #{tpu_custom_call.1} parent=1 // pred_check
      _
    $region67: #{tpu_custom_call.1} parent=1 // pred_check_branch
      %787 = sbr.rel (0) target = $region69
    $region68: #{tpu_custom_call.1} parent=1 // pred_region
      %s789 = ssub.s32 256, 256
      %790 = vsyncadd [#allocation4], %s789
      %s791 = sshll.u32 [#allocation11], 4
      %s792 = int_to_ptr.vmem [resolvable:$true] %s791
      %797 = dma.vmem_to_hbm [thread:$0]  %s792, 256, %s11, [#allocation4], 64, 64, 4
    $region69: #{tpu_custom_call.1} parent=1 // pred_fallthru
      _
    // Predicated region
    $region70: #{tpu_custom_call.1} parent=1 // pred_check
      _
    $region71: #{tpu_custom_call.1} parent=1 // pred_check_branch
      %799 = sbr.rel (0) target = $region73
    $region72: #{tpu_custom_call.1} parent=1 // pred_region
      %800 = dma.done [#allocation4], 256
    $region73: #{tpu_custom_call.1} parent=1 // pred_fallthru
      _
    %801 = vsyncpa [#allocation3], 1
    %802 = vsyncpa [#allocation6], 1
    %803 = vsyncpa [#allocation9], 1
    %804 = vsyncpa [#allocation4], 1

</llo_original>
